<compile_context>
chip_gen: v6e
topology: v6e:2x2x1
jax: 0.10.0
libtpu: 0.0.40
codegen_flags: <defaults>
</compile_context>

<pallas_src>
import math
import functools

import jax
import jax.numpy as jnp
from jax import lax
from jax.experimental import pallas as pl
from jax.experimental.pallas import tpu as pltpu

_LN_EPS = 1e-5
_NEG_INF = -1e30
_MATMUL_DTYPE = jnp.bfloat16            # MXU operand / activation-stream dtype


def _round_up(x, m):
    return ((x + m - 1) // m) * m


def _vmem_limit_bytes():
    """Generation-aware scoped-VMEM limit: ~48 MiB on 64-MiB parts (v7x),
    ~96 MiB on 128-MiB parts (v5e/v6e); conservative fallback if unknown."""
    cap = None
    try:
        info = pltpu.get_tpu_info()
        cap = getattr(info, "vmem_capacity_bytes", None)
    except Exception:
        cap = None
    if cap is None or cap <= 64 * 1024 * 1024:
        return 48 * 1024 * 1024
    return 96 * 1024 * 1024


_VMEM_LIMIT = _vmem_limit_bytes()


def _pick_tile(dim, max_tile, min_tile):
    """Tile choice that avoids padded-compute blowup.
    dim <= max_tile -> use the full dim (exempt from the (8,128) rule);
    otherwise pick the power-of-two tile in [min_tile, max_tile] minimizing padding."""
    if dim <= max_tile:
        return dim
    best, best_pad = min_tile, None
    t = max_tile
    while t >= min_tile:
        pad = (-dim) % t
        if best_pad is None or pad < best_pad:
            best, best_pad = t, pad
        t //= 2
    return best


# ----------------------------------------------------------------------------
# Tiled linear kernel: out = act(x @ w + b)
# ----------------------------------------------------------------------------
def _linear_kernel(x_ref, w_ref, b_ref, o_ref, acc_ref, *, activation):
    @pl.when(pl.program_id(2) == 0)
    def _init():
        acc_ref[...] = jnp.zeros_like(acc_ref)

    x = x_ref[...]
    if x.dtype != _MATMUL_DTYPE:          # cast on the VMEM tile, not as an XLA pass
        x = x.astype(_MATMUL_DTYPE)
    acc_ref[...] += jnp.dot(x, w_ref[...], preferred_element_type=jnp.float32)

    @pl.when(pl.program_id(2) == pl.num_programs(2) - 1)
    def _store():
        out = acc_ref[...] + b_ref[...]
        if activation == "relu":
            out = jnp.maximum(out, 0.0)
        o_ref[...] = out.astype(o_ref.dtype)
        # TODO(synk): residual-add + LayerNorm could be fused into this epilogue for
        # the wo/w2 projections (when tn spans full rows) to save one HBM round trip.


def linear(x, w, b, activation=None, *, out_dtype=jnp.float32, cost_estimate=None):
    """x: (M, K), w: (K, N) bf16, b: (1, N) f32 -> (M, N) out_dtype."""
    M, K = x.shape
    N = w.shape[1]

    tm = _pick_tile(M, 512, 128)
    tn = _pick_tile(N, 1024, 128)
    tk = _pick_tile(K, 1024, 128)
    Mp, Np, Kp = _round_up(M, tm), _round_up(N, tn), _round_up(K, tk)

    if (Mp, Kp) != (M, K):
        x = jnp.pad(x, ((0, Mp - M), (0, Kp - K)))
    if (Kp, Np) != (K, N):
        w = jnp.pad(w, ((0, Kp - K), (0, Np - N)))
    if Np != N:
        b = jnp.pad(b, ((0, 0), (0, Np - N)))

    # N tiling leads the grid so both v7x TensorCores get work even when M fits
    # in a single row tile (small decoder-side B*St).
    grid = (Np // tn, Mp // tm, Kp // tk)
    out = pl.pallas_call(
        functools.partial(_linear_kernel, activation=activation),
        out_shape=jax.ShapeDtypeStruct((Mp, Np), out_dtype),
        grid_spec=pltpu.PrefetchScalarGridSpec(
            num_scalar_prefetch=0,
            grid=grid,
            in_specs=[
                pl.BlockSpec((tm, tk), lambda j, i, k: (i, k)),
                pl.BlockSpec((tk, tn), lambda j, i, k: (k, j)),
                pl.BlockSpec((1, tn), lambda j, i, k: (0, j)),
            ],
            out_specs=pl.BlockSpec((tm, tn), lambda j, i, k: (i, j)),
            scratch_shapes=[pltpu.VMEM((tm, tn), jnp.float32)],
        ),
        compiler_params=pltpu.CompilerParams(
            dimension_semantics=("parallel", "parallel", "arbitrary"),
            vmem_limit_bytes=_VMEM_LIMIT),
        cost_estimate=cost_estimate,
    )(x, w, b)
    if (Mp, Np) != (M, N):
        out = out[:M, :N]
    return out


# ----------------------------------------------------------------------------
# Flash-style attention (online softmax), all heads of one batch element per step
# grid = (B, q_tiles, kv_tiles); blocks are (H, tq, dh)
# ----------------------------------------------------------------------------
def _flash_body(q_ref, k_ref, v_ref, mask_ref, o_ref, m_sc, l_sc, acc_sc,
                *, scale, causal, kv_len, tq, tkv):
    qi = pl.program_id(1)
    ki = pl.program_id(2)

    @pl.when(ki == 0)
    def _init():
        m_sc[...] = jnp.full_like(m_sc, -jnp.inf)
        l_sc[...] = jnp.zeros_like(l_sc)
        acc_sc[...] = jnp.zeros_like(acc_sc)

    q = q_ref[...]                        # (H, tq, dh)  bf16
    k = k_ref[...]                        # (H, tkv, dh) bf16
    s = jnp.einsum("hqd,hkd->hqk", q, k,
                   preferred_element_type=jnp.float32) * scale

    if mask_ref is not None:              # static: only emitted for explicit masks
        s = s + mask_ref[...]             # (tq, tkv) broadcasts over heads

    if causal or (kv_len is not None):    # static: in-kernel mask, no HBM traffic
        k_pos = ki * tkv + lax.broadcasted_iota(jnp.int32, (tq, tkv), 1)
        if causal:
            q_pos = qi * tq + lax.broadcasted_iota(jnp.int32, (tq, tkv), 0)
            keep = k_pos <= q_pos
            if kv_len is not None:
                keep = jnp.logical_and(keep, k_pos < kv_len)
        else:
            keep = k_pos < kv_len
        s = jnp.where(keep, s, _NEG_INF)

    m_prev = m_sc[...]
    m_new = jnp.maximum(m_prev, jnp.max(s, axis=-1, keepdims=True))
    alpha = jnp.exp(m_prev - m_new)
    p = jnp.exp(s - m_new)
    l_sc[...] = alpha * l_sc[...] + jnp.sum(p, axis=-1, keepdims=True)
    acc_sc[...] = alpha * acc_sc[...] + jnp.einsum(
        "hqk,hkd->hqd", p.astype(v_ref.dtype), v_ref[...],
        preferred_element_type=jnp.float32)
    m_sc[...] = m_new

    @pl.when(ki == pl.num_programs(2) - 1)
    def _finalize():
        o_ref[...] = (acc_sc[...] *
                      pl.reciprocal(l_sc[...], approx=True)).astype(o_ref.dtype)


def _flash_kernel(q_ref, k_ref, v_ref, o_ref, m_sc, l_sc, acc_sc,
                  *, scale, causal, kv_len, tq, tkv):
    _flash_body(q_ref, k_ref, v_ref, None, o_ref, m_sc, l_sc, acc_sc,
                scale=scale, causal=causal, kv_len=kv_len, tq=tq, tkv=tkv)


def _flash_kernel_masked(q_ref, k_ref, v_ref, mask_ref, o_ref, m_sc, l_sc, acc_sc,
                         *, scale, causal, kv_len, tq, tkv):
    _flash_body(q_ref, k_ref, v_ref, mask_ref, o_ref, m_sc, l_sc, acc_sc,
                scale=scale, causal=causal, kv_len=kv_len, tq=tq, tkv=tkv)


def flash_attention(q, k, v, *, num_heads, scale, mask=None, causal=False):
    """q: (B*H, Sq, dh), k/v: (B*H, Sk, dh) bf16; mask: None | (Sq, Sk) bool/float."""
    BH, Sq, dh = q.shape
    Sk = k.shape[1]
    H = num_heads
    B = BH // H

    tq = _pick_tile(Sq, 256, 128)
    tkv = _pick_tile(Sk, 512, 128)
    Sqp, Skp = _round_up(Sq, tq), _round_up(Sk, tkv)

    if Sqp != Sq:
        q = jnp.pad(q, ((0, 0), (0, Sqp - Sq), (0, 0)))
    if Skp != Sk:
        k = jnp.pad(k, ((0, 0), (0, Skp - Sk), (0, 0)))
        v = jnp.pad(v, ((0, 0), (0, Skp - Sk), (0, 0)))
    kv_len = Sk if Skp != Sk else None

    grid = (B, Sqp // tq, Skp // tkv)
    q_spec = pl.BlockSpec((H, tq, dh), lambda b, qi, ki: (b, qi, 0))
    kv_spec = pl.BlockSpec((H, tkv, dh), lambda b, qi, ki: (b, ki, 0))
    o_spec = pl.BlockSpec((H, tq, dh), lambda b, qi, ki: (b, qi, 0))
    scratch = [pltpu.VMEM((H, tq, 1), jnp.float32),
               pltpu.VMEM((H, tq, 1), jnp.float32),
               pltpu.VMEM((H, tq, dh), jnp.float32)]

    common = dict(scale=scale, causal=causal, kv_len=kv_len, tq=tq, tkv=tkv)
    if mask is None:
        kern = functools.partial(_flash_kernel, **common)
        in_specs = [q_spec, kv_spec, kv_spec]
        args = (q, k, v)
    else:
        mask = jnp.asarray(mask)
        if mask.dtype == jnp.bool_:
            maskf = jnp.where(mask, _NEG_INF, 0.0).astype(jnp.float32)  # torch: True = drop
        else:
            maskf = jnp.maximum(mask.astype(jnp.float32), _NEG_INF)     # clamp -inf
        maskf = maskf.reshape(Sq, Sk)
        if (Sqp, Skp) != (Sq, Sk):
            maskf = jnp.pad(maskf, ((0, Sqp - Sq), (0, Skp - Sk)))
        kern = functools.partial(_flash_kernel_masked, **common)
        in_specs = [q_spec, kv_spec, kv_spec,
                    pl.BlockSpec((tq, tkv), lambda b, qi, ki: (qi, ki))]
        args = (q, k, v, maskf)

    out = pl.pallas_call(
        kern,
        out_shape=jax.ShapeDtypeStruct((BH, Sqp, dh), _MATMUL_DTYPE),
        grid_spec=pltpu.PrefetchScalarGridSpec(
            num_scalar_prefetch=0,
            grid=grid,
            in_specs=in_specs,
            out_specs=o_spec,
            scratch_shapes=scratch),
        compiler_params=pltpu.CompilerParams(
            dimension_semantics=("parallel", "parallel", "arbitrary"),
            vmem_limit_bytes=_VMEM_LIMIT),
    )(*args)
    if Sqp != Sq:
        out = out[:, :Sq, :]
    return out


# ----------------------------------------------------------------------------
# (residual-add +) LayerNorm kernels, row-tiled, f32 math, configurable out dtype
# ----------------------------------------------------------------------------
def _ln_math(y, g, b, eps):
    mean = jnp.mean(y, axis=-1, keepdims=True)
    var = jnp.mean(jnp.square(y - mean), axis=-1, keepdims=True)
    return (y - mean) * lax.rsqrt(var + eps) * g + b


def _add_ln_kernel(x_ref, r_ref, g_ref, b_ref, o_ref, *, eps):
    y = x_ref[...].astype(jnp.float32) + r_ref[...].astype(jnp.float32)
    o_ref[...] = _ln_math(y, g_ref[...], b_ref[...], eps).astype(o_ref.dtype)


def _ln_kernel(x_ref, g_ref, b_ref, o_ref, *, eps):
    y = x_ref[...].astype(jnp.float32)
    o_ref[...] = _ln_math(y, g_ref[...], b_ref[...], eps).astype(o_ref.dtype)


def layer_norm(x, gamma, beta, residual=None, *, out_dtype=_MATMUL_DTYPE):
    """LayerNorm(x [+ residual]) over last dim. x: (B, S, D)."""
    B, S, D = x.shape
    M = B * S
    tm = _pick_tile(M, 512, 128)
    Mp = _round_up(M, tm)

    args = [x.reshape(M, D)]
    if residual is not None:
        args.append(residual.reshape(M, D))
    if Mp != M:
        args = [jnp.pad(a, ((0, Mp - M), (0, 0))) for a in args]
    args += [gamma, beta]

    row_spec = pl.BlockSpec((tm, D), lambda i: (i, 0))
    par_spec = pl.BlockSpec((1, D), lambda i: (0, 0))
    in_specs = [row_spec] * (2 if residual is not None else 1) + [par_spec, par_spec]
    kern = functools.partial(
        _add_ln_kernel if residual is not None else _ln_kernel, eps=_LN_EPS)

    out = pl.pallas_call(
        kern,
        out_shape=jax.ShapeDtypeStruct((Mp, D), out_dtype),
        grid_spec=pltpu.PrefetchScalarGridSpec(
            num_scalar_prefetch=0,
            grid=(Mp // tm,),
            in_specs=in_specs,
            out_specs=row_spec),
        compiler_params=pltpu.CompilerParams(
            dimension_semantics=("parallel",),
            vmem_limit_bytes=_VMEM_LIMIT),
    )(*args)
    if Mp != M:
        out = out[:M]
    return out.reshape(B, S, D)


# ----------------------------------------------------------------------------
# Model pieces built on the kernels
# ----------------------------------------------------------------------------
def multi_head_attention(p, q_in, kv_in, num_heads, mask=None, causal=False,
                         self_attn=True):
    B, Sq, d = q_in.shape
    Sk = kv_in.shape[1]
    dh = d // num_heads
    scale = 1.0 / math.sqrt(dh)

    if self_attn:
        qkv = linear(q_in.reshape(B * Sq, d), p["w_qkv"], p["b_qkv"],
                     out_dtype=_MATMUL_DTYPE)
        q, k, v = qkv[:, :d], qkv[:, d:2 * d], qkv[:, 2 * d:]
    else:  # cross-attention: separate weights, no per-forward weight slicing
        q = linear(q_in.reshape(B * Sq, d), p["w_q"], p["b_q"],
                   out_dtype=_MATMUL_DTYPE)
        kv = linear(kv_in.reshape(B * Sk, d), p["w_kv"], p["b_kv"],
                    out_dtype=_MATMUL_DTYPE)
        k, v = kv[:, :d], kv[:, d:]

    # TODO(synk): head split/merge transposes stay in XLA (bf16, half the old traffic);
    # reading heads straight out of the (B,S,H*dh) projection inside the flash kernel
    # would need lane-dim blocks of width dh (<128), violating the (8,128) BlockSpec rule.
    def split_heads(t, S):
        return (t.reshape(B, S, num_heads, dh)
                 .transpose(0, 2, 1, 3)
                 .reshape(B * num_heads, S, dh))

    qh, kh, vh = split_heads(q, Sq), split_heads(k, Sk), split_heads(v, Sk)

    ctx = flash_attention(qh, kh, vh, num_heads=num_heads, scale=scale,
                          mask=mask, causal=causal)
    ctx = (ctx.reshape(B, num_heads, Sq, dh)
              .transpose(0, 2, 1, 3)
              .reshape(B * Sq, d))
    out = linear(ctx, p["wo"], p["bo"], out_dtype=jnp.float32)
    return out.reshape(B, Sq, d)


def encoder_layer(p, x, num_heads):
    B, S, d = x.shape
    sa = multi_head_attention(p["self_attn"], x, x, num_heads, self_attn=True)
    x = layer_norm(x, p["ln1_g"], p["ln1_b"], residual=sa, out_dtype=_MATMUL_DTYPE)
    h = linear(x.reshape(B * S, d), p["w1"], p["b1"], activation="relu",
               out_dtype=_MATMUL_DTYPE)
    h = linear(h, p["w2"], p["b2"], out_dtype=jnp.float32).reshape(B, S, d)
    x = layer_norm(x, p["ln2_g"], p["ln2_b"], residual=h, out_dtype=_MATMUL_DTYPE)
    return x


def decoder_layer(p, x, memory, num_heads, tgt_mask, tgt_causal):
    B, S, d = x.shape
    sa = multi_head_attention(p["self_attn"], x, x, num_heads,
                              mask=tgt_mask, causal=tgt_causal, self_attn=True)
    x = layer_norm(x, p["ln1_g"], p["ln1_b"], residual=sa, out_dtype=_MATMUL_DTYPE)
    ca = multi_head_attention(p["cross_attn"], x, memory, num_heads, self_attn=False)
    x = layer_norm(x, p["ln2_g"], p["ln2_b"], residual=ca, out_dtype=_MATMUL_DTYPE)
    h = linear(x.reshape(B * S, d), p["w1"], p["b1"], activation="relu",
               out_dtype=_MATMUL_DTYPE)
    h = linear(h, p["w2"], p["b2"], out_dtype=jnp.float32).reshape(B, S, d)
    x = layer_norm(x, p["ln3_g"], p["ln3_b"], residual=h, out_dtype=_MATMUL_DTYPE)
    return x


def transformer_forward(params, src, trg, trg_mask=None):
    emb = params["embedding"]
    pe = params["pe"]
    H = params["num_heads"]

    B, Ss = src.shape
    St = trg.shape[1]
    d = emb.shape[1]

    src_x = jnp.take(emb, src, axis=0) + pe[None, :Ss, :]
    trg_x = jnp.take(emb, trg, axis=0) + pe[None, :St, :]

    # trg_mask: None | "causal" (generated in-kernel, zero HBM mask traffic) |
    # explicit (St, St) bool/float mask in PyTorch convention.
    tgt_causal = isinstance(trg_mask, str) and trg_mask == "causal"
    tgt_mask = None if (trg_mask is None or tgt_causal) else trg_mask

    x = src_x
    for lp in params["enc_layers"]:
        x = encoder_layer(lp, x, H)
    memory = layer_norm(x, params["enc_norm_g"], params["enc_norm_b"],
                        out_dtype=_MATMUL_DTYPE)

    y = trg_x
    for lp in params["dec_layers"]:
        y = decoder_layer(lp, y, memory, H, tgt_mask, tgt_causal)
    y = layer_norm(y, params["dec_norm_g"], params["dec_norm_b"],
                   out_dtype=_MATMUL_DTYPE)

    vocab = params["fc_w"].shape[1]
    M = B * St
    # TODO(synk): fc_out weights could be int8 on v5e/v6e or fp8 on v7x to halve the
    # weight-read-bound vocab projection; kept bf16 here for cross-generation portability.
    ce = pl.CostEstimate(
        flops=2 * M * d * vocab, transcendentals=0,
        bytes_accessed=M * d * 2 + d * vocab * 2 + vocab * 4 + M * vocab * 4)
    logits = linear(y.reshape(M, d), params["fc_w"], params["fc_b"],
                    out_dtype=jnp.float32, cost_estimate=ce)
    return logits.reshape(B, St, vocab)


# ----------------------------------------------------------------------------
# Deterministic parameter initialization (weights stored bf16 once, at init)
# ----------------------------------------------------------------------------
def _dense(key, shape, scale=0.02, dtype=_MATMUL_DTYPE):
    return (jax.random.normal(key, shape, jnp.float32) * scale).astype(dtype)


def _init_self_attn(key, d):
    ks = jax.random.split(key, 2)
    return {
        "w_qkv": _dense(ks[0], (d, 3 * d)),
        "b_qkv": jnp.zeros((1, 3 * d), jnp.float32),
        "wo": _dense(ks[1], (d, d)),
        "bo": jnp.zeros((1, d), jnp.float32),
    }


def _init_cross_attn(key, d):
    ks = jax.random.split(key, 3)
    return {
        "w_q": _dense(ks[0], (d, d)),
        "b_q": jnp.zeros((1, d), jnp.float32),
        "w_kv": _dense(ks[1], (d, 2 * d)),
        "b_kv": jnp.zeros((1, 2 * d), jnp.float32),
        "wo": _dense(ks[2], (d, d)),
        "bo": jnp.zeros((1, d), jnp.float32),
    }


def _init_enc_layer(key, d, dff):
    ks = jax.random.split(key, 3)
    return {
        "self_attn": _init_self_attn(ks[0], d),
        "w1": _dense(ks[1], (d, dff)), "b1": jnp.zeros((1, dff), jnp.float32),
        "w2": _dense(ks[2], (dff, d)), "b2": jnp.zeros((1, d), jnp.float32),
        "ln1_g": jnp.ones((1, d), jnp.float32), "ln1_b": jnp.zeros((1, d), jnp.float32),
        "ln2_g": jnp.ones((1, d), jnp.float32), "ln2_b": jnp.zeros((1, d), jnp.float32),
    }


def _init_dec_layer(key, d, dff):
    ks = jax.random.split(key, 4)
    return {
        "self_attn": _init_self_attn(ks[0], d),
        "cross_attn": _init_cross_attn(ks[1], d),
        "w1": _dense(ks[2], (d, dff)), "b1": jnp.zeros((1, dff), jnp.float32),
        "w2": _dense(ks[3], (dff, d)), "b2": jnp.zeros((1, d), jnp.float32),
        "ln1_g": jnp.ones((1, d), jnp.float32), "ln1_b": jnp.zeros((1, d), jnp.float32),
        "ln2_g": jnp.ones((1, d), jnp.float32), "ln2_b": jnp.zeros((1, d), jnp.float32),
        "ln3_g": jnp.ones((1, d), jnp.float32), "ln3_b": jnp.zeros((1, d), jnp.float32),
    }


def _positional_encoding(d_model, max_len):
    position = jnp.arange(max_len, dtype=jnp.float32)[:, None]
    div_term = jnp.exp(jnp.arange(0, d_model, 2, dtype=jnp.float32)
                       * (-math.log(10000.0) / d_model))
    pe = jnp.zeros((max_len, d_model), jnp.float32)
    pe = pe.at[:, 0::2].set(jnp.sin(position * div_term))
    pe = pe.at[:, 1::2].set(jnp.cos(position * div_term))
    return pe


def init_params(key, vocab_size, embed_dim, num_heads, num_layers, dff=2048, max_len=64):
    keys = jax.random.split(key, 3 + 2 * num_layers)
    enc_layers = [_init_enc_layer(keys[3 + i], embed_dim, dff) for i in range(num_layers)]
    dec_layers = [_init_dec_layer(keys[3 + num_layers + i], embed_dim, dff)
                  for i in range(num_layers)]
    return {
        "num_heads": num_heads,
        "embedding": _dense(keys[0], (vocab_size, embed_dim), scale=1.0,
                            dtype=jnp.float32),
        "pe": _positional_encoding(embed_dim, max_len),
        "enc_layers": enc_layers,
        "dec_layers": dec_layers,
        "enc_norm_g": jnp.ones((1, embed_dim), jnp.float32),
        "enc_norm_b": jnp.zeros((1, embed_dim), jnp.float32),
        "dec_norm_g": jnp.ones((1, embed_dim), jnp.float32),
        "dec_norm_b": jnp.zeros((1, embed_dim), jnp.float32),
        "fc_w": _dense(keys[1], (embed_dim, vocab_size)),
        "fc_b": jnp.zeros((1, vocab_size), jnp.float32),
    }


# ----------------------------------------------------------------------------
# Demo
# ----------------------------------------------------------------------------
if __name__ == "__main__":
    # TODO(synk): dropout layers of nn.Transformer are omitted (eval-mode / identity).
    # TODO(synk): demo D=32 / dh=8 underfills the 128-lane vreg; real configs should
    # use d_model / head_dim that are multiples of 128 for lane-dense tiles.
    VOCAB, D, HEADS, LAYERS = 50, 32, 4, 2
    B, S = 2, 8

    root = jax.random.PRNGKey(0)
    k_params, k_src, k_trg = jax.random.split(root, 3)

    params = init_params(k_params, VOCAB, D, HEADS, LAYERS)

    src = jax.random.randint(k_src, (B, S), 0, VOCAB, dtype=jnp.int32)
    trg = jax.random.randint(k_trg, (B, S), 0, VOCAB, dtype=jnp.int32)

    # 1) plain forward (matches the original module's trg_mask=None usage)
    logits = transformer_forward(params, src, trg, trg_mask=None)
    logits = jax.block_until_ready(logits)
    assert logits.shape == (B, S, VOCAB), logits.shape
    assert logits.dtype == jnp.float32

    # 2) exercise the in-kernel causal target mask (decoder self-attention)
    logits_c = transformer_forward(params, src, trg, trg_mask="causal")
    logits_c = jax.block_until_ready(logits_c)
    assert logits_c.shape == (B, S, VOCAB)
    assert bool(jnp.all(jnp.isfinite(logits_c)))

    print("KERNEL_OK")
</pallas_src>

<mosaic_0001>
module attributes {stable_mosaic.version = 11 : i64} {
  func.func @_linear_kernel(%arg0: i32, %arg1: i32, %arg2: i32, %arg3: memref<16x32xf32, #tpu.memory_space<vmem>>, %arg4: memref<32x96xbf16, #tpu.memory_space<vmem>>, %arg5: memref<1x96xf32, #tpu.memory_space<vmem>>, %arg6: memref<16x96xbf16, #tpu.memory_space<vmem>>, %arg7: memref<16x96xf32, #tpu.memory_space<vmem>>) attributes {dimension_semantics = [#tpu.dimension_semantics<parallel>, #tpu.dimension_semantics<parallel>, #tpu.dimension_semantics<arbitrary>], iteration_bounds = array<i64: 1, 1, 1>, scalar_prefetch = 0 : i64, scratch_operands = 1 : i64, tpu.core_type = #tpu.core_type<tc>, window_params = [{transform_indices = @transform_0, window_bounds = array<i64: 16, 32>}, {transform_indices = @transform_1, window_bounds = array<i64: 32, 96>}, {transform_indices = @transform_2, window_bounds = array<i64: 1, 96>}, {transform_indices = @transform_3, window_bounds = array<i64: 16, 96>}]} {
    %c0_i32 = arith.constant 0 : i32
    %0 = arith.cmpi eq, %arg2, %c0_i32 : i32
    %1 = arith.extui %0 : i1 to i32
    %c0_i32_0 = arith.constant 0 : i32
    %2 = arith.cmpi ne, %1, %c0_i32_0 : i32
    scf.if %2 {
      %cst_10 = arith.constant 0.000000e+00 : f32
      %13 = vector.broadcast %cst_10 : f32 to vector<16x96xf32>
      %c0_11 = arith.constant 0 : index
      %c0_12 = arith.constant 0 : index
      %14 = vector.load %arg7[%c0_11, %c0_12] : memref<16x96xf32, #tpu.memory_space<vmem>>, vector<16x96xf32>
      tpu.vector_store %arg7[%c0_11, %c0_12], %13 {strides = array<i32>} : memref<16x96xf32, #tpu.memory_space<vmem>>, vector<16x96xf32>,
    } else {
    }
    %c0 = arith.constant 0 : index
    %c0_1 = arith.constant 0 : index
    %3 = vector.load %arg3[%c0, %c0_1] : memref<16x32xf32, #tpu.memory_space<vmem>>, vector<16x32xf32>
    %4 = arith.truncf %3 : vector<16x32xf32> to vector<16x32xbf16>
    %c0_2 = arith.constant 0 : index
    %c0_3 = arith.constant 0 : index
    %5 = vector.load %arg7[%c0_2, %c0_3] : memref<16x96xf32, #tpu.memory_space<vmem>>, vector<16x96xf32>
    %c0_4 = arith.constant 0 : index
    %c0_5 = arith.constant 0 : index
    %6 = vector.load %arg4[%c0_4, %c0_5] : memref<32x96xbf16, #tpu.memory_space<vmem>>, vector<32x96xbf16>
    %cst = arith.constant dense<0.000000e+00> : vector<16x96xf32>
    %7 = tpu.matmul %4, %6, %cst {dimension_numbers = #tpu.dot_dimension_numbers<[1], [0], [0], [1], [0, 0, 1, 1], [], []>} : vector<16x32xbf16>, vector<32x96xbf16>, vector<16x96xf32> -> vector<16x96xf32>
    %8 = arith.addf %5, %7 : vector<16x96xf32>
    %c0_6 = arith.constant 0 : index
    %c0_7 = arith.constant 0 : index
    %9 = vector.load %arg7[%c0_6, %c0_7] : memref<16x96xf32, #tpu.memory_space<vmem>>, vector<16x96xf32>
    tpu.vector_store %arg7[%c0_6, %c0_7], %8 {strides = array<i32>} : memref<16x96xf32, #tpu.memory_space<vmem>>, vector<16x96xf32>,
    %c0_i32_8 = arith.constant 0 : i32
    %10 = arith.cmpi eq, %arg2, %c0_i32_8 : i32
    %11 = arith.extui %10 : i1 to i32
    %c0_i32_9 = arith.constant 0 : i32
    %12 = arith.cmpi ne, %11, %c0_i32_9 : i32
    scf.if %12 {
      %c0_10 = arith.constant 0 : index
      %c0_11 = arith.constant 0 : index
      %13 = vector.load %arg7[%c0_10, %c0_11] : memref<16x96xf32, #tpu.memory_space<vmem>>, vector<16x96xf32>
      %c0_12 = arith.constant 0 : index
      %c0_13 = arith.constant 0 : index
      %14 = vector.load %arg5[%c0_12, %c0_13] : memref<1x96xf32, #tpu.memory_space<vmem>>, vector<1x96xf32>
      %15 = vector.broadcast %14 : vector<1x96xf32> to vector<16x96xf32>
      %16 = arith.addf %13, %15 : vector<16x96xf32>
      %17 = arith.truncf %16 : vector<16x96xf32> to vector<16x96xbf16>
      %c0_14 = arith.constant 0 : index
      %c0_15 = arith.constant 0 : index
      %18 = vector.load %arg6[%c0_14, %c0_15] : memref<16x96xbf16, #tpu.memory_space<vmem>>, vector<16x96xbf16>
      tpu.vector_store %arg6[%c0_14, %c0_15], %17 {strides = array<i32>} : memref<16x96xbf16, #tpu.memory_space<vmem>>, vector<16x96xbf16>,
    } else {
    }
    return
  }
  func.func @transform_0(%arg0: i32, %arg1: i32, %arg2: i32) -> (i32, i32) {
    %c0_i32 = arith.constant 0 : i32
    return %arg1, %arg2 : i32, i32
  }
  func.func @transform_1(%arg0: i32, %arg1: i32, %arg2: i32) -> (i32, i32) {
    %c0_i32 = arith.constant 0 : i32
    return %arg2, %arg0 : i32, i32
  }
  func.func @transform_2(%arg0: i32, %arg1: i32, %arg2: i32) -> (i32, i32) {
    %c0_i32 = arith.constant 0 : i32
    %c0_i32_0 = arith.constant 0 : i32
    return %c0_i32, %arg0 : i32, i32
  }
  func.func @transform_3(%arg0: i32, %arg1: i32, %arg2: i32) -> (i32, i32) {
    %c0_i32 = arith.constant 0 : i32
    return %arg1, %arg0 : i32, i32
  }
}

</mosaic_0001>

<llo_original>
// kernel: tpu_custom_call.1
$region0: #{tpu_custom_call.1}
  #allocation0 [shape = 'u32[]', space=smem, size = 0x4, offset = 0x4, fixed_abs, tag = 'smem constant byte address 0x4 - core index']
  #allocation1 [shape = 'u32[144,128]{1,0:T(1,128)}', space=vmem, size = 0x12000, scoped, tag = 'internal scratch']
  #allocation2 [shape = 'f32[16,96]{1,0:T(8,128)}', space=vmem, size = 0x2000, scoped, tag = 'scratch operand']
  %s0 = inlined_call_operand.hbm [shape: f32[16,32], index: 0, kind: input, shape index: {}]
  %s1 = inlined_call_operand.hbm [shape: bf16[32,96], index: 1, kind: input, shape index: {}]
  %s2 = inlined_call_operand.vmem [shape: f32[1,96], index: 2, kind: input, shape index: {}]
  %s3 = inlined_call_operand.hbm [shape: bf16[16,96], index: 3, kind: output, shape index: {}]
  %s4 = sld [smem:[#allocation0]]
  $region38: #{tpu_custom_call.1} parent=0
    _
  %s6 = ssub.s32 1, %s4
  %s7 = scalar_select 0, %s6, %s4
  $region1: #{tpu_custom_call.1} parent=0
    #allocation3 [shape = 'u8[8192]{0}', space=vmem, size = 0x2000, scoped, tag = 'input window, operand 0, single buffered']
    #allocation4 [shape = 's32[1]{0}', space=sflag, size = 0x4, scoped, tag = 'scoped memory for tpu_custom_call.1']
    #allocation5 [shape = 's32[1]{0}', space=sflag, size = 0x4, scoped, tag = 'scoped memory for tpu_custom_call.1']
    #allocation6 [shape = 'u8[8192]{0}', space=vmem, size = 0x2000, scoped, tag = 'input window, operand 1, single buffered']
    #allocation7 [shape = 's32[1]{0}', space=sflag, size = 0x4, scoped, tag = 'scoped memory for tpu_custom_call.1']
    #allocation8 [shape = 'u8[4096]{0}', space=vmem, size = 0x1000, scoped, tag = 'output window, operand 0, single buffered']
    %8 = vsyncpa [#allocation4], 0
    %9 = vsyncpa [#allocation7], 0
    %10 = vsyncpa [#allocation5], 0
    // Predicated region
    $region2: #{tpu_custom_call.1} parent=1 // pred_check
      _
    $region3: #{tpu_custom_call.1} parent=1 // pred_check_branch
      %12 = sbr.rel (0) target = $region5
    $region4: #{tpu_custom_call.1} parent=1 // pred_region
      %s14 = ssub.s32 256, 256
      %15 = vsyncadd [#allocation4], %s14
      %s16 = sshll.u32 [#allocation3], 4
      %s17 = int_to_ptr.vmem [resolvable:$true] %s16
      %22 = dma.hbm_to_vmem [thread:$0]  %s0, 256, %s17, [#allocation4], 128, 128, 8
    $region5: #{tpu_custom_call.1} parent=1 // pred_fallthru
      _
    // Predicated region
    $region6: #{tpu_custom_call.1} parent=1 // pred_check
      _
    $region7: #{tpu_custom_call.1} parent=1 // pred_check_branch
      %24 = sbr.rel (0) target = $region9
    $region8: #{tpu_custom_call.1} parent=1 // pred_region
      %s26 = ssub.s32 256, 256
      %27 = vsyncadd [#allocation7], %s26
      %s28 = sshll.u32 [#allocation6], 4
      %s29 = int_to_ptr.vmem [resolvable:$true] %s28
      %34 = dma.hbm_to_vmem [thread:$0]  %s1, 256, %s29, [#allocation7], 64, 64, 4
    $region9: #{tpu_custom_call.1} parent=1 // pred_fallthru
      _
    // Predicated region
    $region10: #{tpu_custom_call.1} parent=1 // pred_check
      _
    $region11: #{tpu_custom_call.1} parent=1 // pred_check_branch
      %36 = sbr.rel (0) target = $region13
    $region12: #{tpu_custom_call.1} parent=1 // pred_region
      _
    $region13: #{tpu_custom_call.1} parent=1 // pred_fallthru
      _
    // Predicated region
    $region14: #{tpu_custom_call.1} parent=1 // pred_check
      _
    $region15: #{tpu_custom_call.1} parent=1 // pred_check_branch
      %38 = sbr.rel (0) target = $region17
    $region16: #{tpu_custom_call.1} parent=1 // pred_region
      %39 = dma.done [#allocation4], 256
    $region17: #{tpu_custom_call.1} parent=1 // pred_fallthru
      _
    // Predicated region
    $region18: #{tpu_custom_call.1} parent=1 // pred_check
      _
    $region19: #{tpu_custom_call.1} parent=1 // pred_check_branch
      %41 = sbr.rel (0) target = $region21
    $region20: #{tpu_custom_call.1} parent=1 // pred_region
      %42 = dma.done [#allocation7], 256
    $region21: #{tpu_custom_call.1} parent=1 // pred_fallthru
      _
    %p44 = scmp.eq.s32.totalorder 0, 0
    // Predicated region
    $region22: #{tpu_custom_call.1} parent=1 // pred_check
      %p45 = pneg %p44
    $region23: #{tpu_custom_call.1} parent=1 // pred_check_branch
      %47 = sbr.rel (%p45) target = $region25
    $region24: #{tpu_custom_call.1} parent=1 // pred_region
      %vm48 = vcmask 785408
      %49 = vst.msk [vmem:[#allocation2] sm:$0xff] %vm48, 0.0
      %50 = vst.msk [vmem:[#allocation2 + $0x8] sm:$0xff] %vm48, 0.0
    $region25: #{tpu_custom_call.1} parent=1 // pred_fallthru
      _
    %v51 = vld [vmem:[#allocation3] sm:$0xff]
    %v52 = vld [vmem:[#allocation3 + $0x8] sm:$0xff]
    %v53 = vpack.c.bf16 %v52, %v51
    %v54 = vld [vmem:[#allocation2] sm:$0xff]
    %v55 = vld [vmem:[#allocation2 + $0x8] sm:$0xff]
    %v56 = vld [vmem:[#allocation6] sm:$0xf]
    %v57 = vld [vmem:[#allocation6 + $0x4] sm:$0xf]
    %v58 = vld [vmem:[#allocation6 + $0x8] sm:$0xf]
    %v59 = vld [vmem:[#allocation6 + $0xc] sm:$0xf]
    %v64 = vunpack.c.l.b16 %v56
    %v65 = vunpack.c.l.b16 %v57
    %v66 = vunpack.c.l.b16 %v58
    %v67 = vunpack.c.l.b16 %v59
    %v68 = vpack.c.b16 %v65, %v64
    %v69 = vpack.c.b16 %v67, %v66
    %vm72 = vcmask 261120
    %v74 = vsel %vm72, %v53, 0
    %76 = vmatprep.subr.bf16.mxu0 0
    %77 = vmatpush1.bf16.msra.mxu0 0
    %78 = vmatprep.subr.bf16.mxu0 0
    %79 = vmatpush1.bf16.msra.mxu0 0
    %80 = vmatprep.subr.bf16.mxu0 0
    %81 = vmatpush1.bf16.msra.mxu0 0
    %82 = vmatprep.subr.bf16.mxu0 0
    %83 = vmatpush1.bf16.msra.mxu0 0
    %84 = vmatprep.subr.bf16.mxu0 0
    %85 = vmatpush1.bf16.msra.mxu0 0
    %86 = vmatprep.subr.bf16.mxu0 0
    %87 = vmatpush1.bf16.msra.mxu0 0
    %88 = vmatprep.subr.bf16.mxu0 0
    %89 = vmatpush1.bf16.msra.mxu0 %v69
    %90 = vmatprep.subr.bf16.mxu0 0
    %91 = vmatpush1.bf16.msra.mxu0 %v68
    %92 = vmatprep.subr.bf16.mxu0 0
    %93 = vmatpush2.bf16.msra.mxu0 0
    %94 = vmatprep.subr.bf16.mxu0 0
    %95 = vmatpush2.bf16.msra.mxu0 0
    %96 = vmatprep.subr.bf16.mxu0 0
    %97 = vmatpush2.bf16.msra.mxu0 0
    %98 = vmatprep.subr.bf16.mxu0 0
    %99 = vmatpush2.bf16.msra.mxu0 0
    %100 = vmatprep.subr.bf16.mxu0 0
    %101 = vmatpush2.bf16.msra.mxu0 0
    %102 = vmatprep.subr.bf16.mxu0 0
    %103 = vmatpush2.bf16.msra.mxu0 0
    %104 = vmatprep.subr.bf16.mxu0 0
    %105 = vmatpush2.bf16.msra.mxu0 0
    %106 = vmatprep.subr.bf16.mxu0 0
    %107 = vmatpush2.bf16.msra.mxu0 0
    %108 = vmatprep.mubr.bf16.mxu0 0
    %109 = vmatmul.mubr.bf16.gmra.mxu0 %v74
    %v110 = vpop.f32.mrf.mxu0
    %v111 = vadd.f32 0.0, %v110
    %v112 = vpop.f32.mrf.mxu0
    %v113 = vpop.f32.mrf.mxu0
    %v114 = vadd.f32 0.0, %v113
    %v115 = vpop.f32.mrf.mxu0
    %116 = vdwg.mxu0
    %v117 = vadd.f32 %v54, %v111
    %v118 = vadd.f32 %v55, %v114
    %vm119 = vcmask 785408
    %120 = vst.msk [vmem:[#allocation2] sm:$0xff] %vm119, %v117
    %121 = vst.msk [vmem:[#allocation2 + $0x8] sm:$0xff] %vm119, %v118
    // Predicated region
    $region26: #{tpu_custom_call.1} parent=1 // pred_check
      %p122 = pneg %p44
    $region27: #{tpu_custom_call.1} parent=1 // pred_check_branch
      %124 = sbr.rel (%p122) target = $region29
    $region28: #{tpu_custom_call.1} parent=1 // pred_region
      %v125 = vld [vmem:[#allocation2] sm:$0xff]
      %v126 = vld [vmem:[#allocation2 + $0x8] sm:$0xff]
      %v127 = vld [vmem:[%s2] sm:$0x1]
      %v129 = vlaneseq
      %v130 = vshrl.u32 %v129, 7
      %v131 = vsub.s32 0, %v130
      %v132 = vrot.slane %v127, %v131
      %v134 = vadd.f32 %v125, %v132
      %v135 = vadd.f32 %v126, %v132
      %v136 = vpack.c.bf16 %v135, %v134
      %v138 = vunpack.c.l.b16 %v136
      %v139 = vunpack.c.h.b16 %v136
      %v140 = vpack.c.b16 %v138, %v138
      %v141 = vpack.c.b16 %v139, %v139
      %vm144 = vcmask 781312
      %145 = vst.msk [vmem:[#allocation8] sm:$0xf] %vm144, %v140
      %146 = vst.msk [vmem:[#allocation8 + $0x4] sm:$0xf] %vm144, %v141
    $region29: #{tpu_custom_call.1} parent=1 // pred_fallthru
      _
    // Predicated region
    $region30: #{tpu_custom_call.1} parent=1 // pred_check
      _
    $region31: #{tpu_custom_call.1} parent=1 // pred_check_branch
      %148 = sbr.rel (0) target = $region33
    $region32: #{tpu_custom_call.1} parent=1 // pred_region
      %s150 = ssub.s32 128, 128
      %151 = vsyncadd [#allocation5], %s150
      %s152 = sshll.u32 [#allocation8], 4
      %s153 = int_to_ptr.vmem [resolvable:$true] %s152
      %158 = dma.vmem_to_hbm [thread:$0]  %s153, 128, %s3, [#allocation5], 64, 64, 4
    $region33: #{tpu_custom_call.1} parent=1 // pred_fallthru
      _
    // Predicated region
    $region34: #{tpu_custom_call.1} parent=1 // pred_check
      _
    $region35: #{tpu_custom_call.1} parent=1 // pred_check_branch
      %160 = sbr.rel (0) target = $region37
    $region36: #{tpu_custom_call.1} parent=1 // pred_region
      %161 = dma.done [#allocation5], 128
    $region37: #{tpu_custom_call.1} parent=1 // pred_fallthru
      _
    %162 = vsyncpa [#allocation4], 1
    %163 = vsyncpa [#allocation7], 1
    %164 = vsyncpa [#allocation5], 1

</llo_original>
